<compile_context>
chip_gen: v7x
topology: tpu7x:2x2x1
jax: 0.10.0
libtpu: 0.0.40
codegen_flags: <defaults>
</compile_context>

<pallas_src>
import math

import jax
import jax.numpy as jnp
import numpy as np
from jax import lax
from jax.experimental import pallas as pl
from jax.experimental.pallas import tpu as pltpu


# ----------------------------- small math helpers ---------------------------

def _layernorm(x, w, b, eps=1e-5):
    # x: (T, C) f32, w/b: (1, C) f32 -- stats kept in f32.
    mu = jnp.mean(x, axis=-1, keepdims=True)
    var = jnp.mean((x - mu) ** 2, axis=-1, keepdims=True)
    return (x - mu) * lax.rsqrt(var + eps) * w + b


def _gelu_tanh(x):
    # matches torch.nn.GELU(approximate='tanh'); computed in f32.
    c = math.sqrt(2.0 / math.pi)
    return 0.5 * x * (1.0 + jnp.tanh(c * (x + 0.044715 * x * x * x)))


def _tile(dim, target):
    # largest tile that evenly divides `dim` (degrades to the full dim for toy shapes).
    return target if dim % target == 0 else dim


# -------------------- kernel 1: LN1 + fused QKV projection ------------------

def _ln_qkv_kernel(x_ref, ln1w_ref, ln1b_ref,
                   wq_ref, wk_ref, wv_ref, bq_ref, bk_ref, bv_ref,
                   q_ref, k_ref, v_ref):
    # LN in f32, matmuls with bf16 operands + f32 accumulation.
    h = _layernorm(x_ref[0], ln1w_ref[...], ln1b_ref[...]).astype(jnp.bfloat16)
    q_ref[0] = (jnp.dot(h, wq_ref[...], preferred_element_type=jnp.float32)
                + bq_ref[...]).astype(q_ref.dtype)
    k_ref[0] = (jnp.dot(h, wk_ref[...], preferred_element_type=jnp.float32)
                + bk_ref[...]).astype(k_ref.dtype)
    v_ref[0] = (jnp.dot(h, wv_ref[...], preferred_element_type=jnp.float32)
                + bv_ref[...]).astype(v_ref.dtype)


# -------------------- kernel 2: flash attention (online softmax) ------------

def _flash_attn_kernel(q_ref, k_ref, v_ref, y_ref, m_ref, l_ref, acc_ref):
    # q/k/v blocks: (1, H, TQ|TK, Dh) bf16; q is already pre-scaled by 1/sqrt(Dh).
    qi = pl.program_id(1)
    ki = pl.program_id(2)
    tq = q_ref.shape[2]
    tk = k_ref.shape[2]

    @pl.when(ki == 0)
    def _():
        m_ref[...] = jnp.full(m_ref.shape, -jnp.inf, dtype=m_ref.dtype)
        l_ref[...] = jnp.zeros(l_ref.shape, dtype=l_ref.dtype)
        acc_ref[...] = jnp.zeros(acc_ref.shape, dtype=acc_ref.dtype)

    q_start = qi * tq
    kv_start = ki * tk

    # Skip KV tiles that lie entirely in the causal future of this query tile.
    @pl.when(kv_start < q_start + tq)
    def _():
        q = q_ref[0]            # (H, TQ, Dh) bf16
        k = k_ref[0]            # (H, TK, Dh) bf16
        v = v_ref[0]            # (H, TK, Dh) bf16
        s = jnp.einsum('htd,hsd->hts', q, k,
                       preferred_element_type=jnp.float32)     # (H, TQ, TK) f32
        row = q_start + lax.broadcasted_iota(jnp.int32, (1, tq, tk), 1)
        col = kv_start + lax.broadcasted_iota(jnp.int32, (1, tq, tk), 2)
        s = jnp.where(row >= col, s, -1e30)

        m_prev = m_ref[...]
        m_new = jnp.maximum(m_prev, jnp.max(s, axis=-1, keepdims=True))
        alpha = jnp.exp(m_prev - m_new)
        p = jnp.exp(s - m_new)
        l_ref[...] = alpha * l_ref[...] + jnp.sum(p, axis=-1, keepdims=True)
        acc_ref[...] = alpha * acc_ref[...] + jnp.einsum(
            'hts,hsd->htd', p.astype(v.dtype), v,
            preferred_element_type=jnp.float32)
        m_ref[...] = m_new

    @pl.when(ki == pl.num_programs(2) - 1)
    def _():
        y_ref[0] = (acc_ref[...] *
                    pl.reciprocal(l_ref[...], approx=True)).astype(y_ref.dtype)


# ------ kernel 3: attn out-proj + residual + LN2 + MLP (tiled hidden) -------

def _proj_mlp_kernel(x_ref, y_ref, wo_ref, bo_ref, ln2w_ref, ln2b_ref,
                     wfc_ref, bfc_ref, wp_ref, bp_ref,
                     out_ref, x1_ref, h2_ref, acc_ref):
    hi = pl.program_id(2)

    @pl.when(hi == 0)
    def _():
        attn = jnp.dot(y_ref[0], wo_ref[...],
                       preferred_element_type=jnp.float32) + bo_ref[...]
        x1 = x_ref[0] + attn                                  # first residual
        x1_ref[...] = x1
        h2_ref[...] = _layernorm(x1, ln2w_ref[...], ln2b_ref[...]).astype(jnp.bfloat16)
        acc_ref[...] = jnp.zeros(acc_ref.shape, dtype=acc_ref.dtype)

    fc = jnp.dot(h2_ref[...], wfc_ref[...],
                 preferred_element_type=jnp.float32) + bfc_ref[...]
    g = _gelu_tanh(fc)
    acc_ref[...] += jnp.dot(g.astype(jnp.bfloat16), wp_ref[...],
                            preferred_element_type=jnp.float32)

    @pl.when(hi == pl.num_programs(2) - 1)
    def _():
        out_ref[0] = x1_ref[...] + acc_ref[...] + bp_ref[...]  # second residual


# ------------------------------- host wrapper --------------------------------

def gpt_block_forward(x, params, n_head, *, tq=128, tk=128, tn=256, th=512):
    B, T, C = x.shape
    assert C % n_head == 0
    Dh = C // n_head
    bf16, f32 = jnp.bfloat16, jnp.float32

    # ----- host-side parameter prep (would be done once at load time) --------
    scale = 1.0 / math.sqrt(Dh)
    w_qkv, b_qkv = params["w_qkv"], params["b_qkv"]
    # fold 1/sqrt(Dh) into the q projection; ship matmul weights in bf16
    w_q = (w_qkv[:, 0 * C:1 * C] * scale).astype(bf16)
    w_k = w_qkv[:, 1 * C:2 * C].astype(bf16)
    w_v = w_qkv[:, 2 * C:3 * C].astype(bf16)
    b_q = (b_qkv[:, 0 * C:1 * C] * scale).astype(f32)
    b_k = b_qkv[:, 1 * C:2 * C].astype(f32)
    b_v = b_qkv[:, 2 * C:3 * C].astype(f32)
    # TODO(synk): tile w_attn_proj over its N dimension for very large n_embd; kept
    #             VMEM-resident in bf16 here.
    w_o = params["w_attn_proj"].astype(bf16)
    b_o = params["b_attn_proj"].astype(f32)
    w_fc = params["w_fc"].astype(bf16)
    b_fc = params["b_fc"].astype(f32)
    w_mp = params["w_mlp_proj"].astype(bf16)
    b_mp = params["b_mlp_proj"].astype(f32)
    ln1w, ln1b = params["ln1_w"].astype(f32), params["ln1_b"].astype(f32)
    ln2w, ln2b = params["ln2_w"].astype(f32), params["ln2_b"].astype(f32)

    TQ = _tile(T, tq)           # query tile
    TK = _tile(T, tk)           # kv tile
    TN = _tile(C, tn)           # qkv-projection output-N tile
    TH = _tile(4 * C, th)       # mlp hidden tile (reduction axis)
    nTq, nTk, nN, nH = T // TQ, T // TK, C // TN, (4 * C) // TH

    vmem_limit = 48 * 1024 * 1024   # fits v7x's 64 MiB/TC budget with double-buffer headroom

    # -------------------- kernel 1: LN1 + fused QKV projection ---------------
    q, k, v = pl.pallas_call(
        _ln_qkv_kernel,
        out_shape=(jax.ShapeDtypeStruct((B, T, C), bf16),
                   jax.ShapeDtypeStruct((B, T, C), bf16),
                   jax.ShapeDtypeStruct((B, T, C), bf16)),
        grid=(B, nTq, nN),
        in_specs=[
            pl.BlockSpec((1, TQ, C), lambda b, t, n: (b, t, 0)),   # x (resident over n)
            pl.BlockSpec((1, C), lambda b, t, n: (0, 0)),          # ln1 w
            pl.BlockSpec((1, C), lambda b, t, n: (0, 0)),          # ln1 b
            pl.BlockSpec((C, TN), lambda b, t, n: (0, n)),         # w_q tile
            pl.BlockSpec((C, TN), lambda b, t, n: (0, n)),         # w_k tile
            pl.BlockSpec((C, TN), lambda b, t, n: (0, n)),         # w_v tile
            pl.BlockSpec((1, TN), lambda b, t, n: (0, n)),         # b_q tile
            pl.BlockSpec((1, TN), lambda b, t, n: (0, n)),         # b_k tile
            pl.BlockSpec((1, TN), lambda b, t, n: (0, n)),         # b_v tile
        ],
        out_specs=(
            pl.BlockSpec((1, TQ, TN), lambda b, t, n: (b, t, n)),
            pl.BlockSpec((1, TQ, TN), lambda b, t, n: (b, t, n)),
            pl.BlockSpec((1, TQ, TN), lambda b, t, n: (b, t, n)),
        ),
        compiler_params=pltpu.CompilerParams(
            dimension_semantics=("parallel", "parallel", "parallel"),
            vmem_limit_bytes=vmem_limit),
    )(x, ln1w, ln1b, w_q, w_k, w_v, b_q, b_k, b_v)

    # Head split is cheap layout plumbing done by XLA; kernels keep lane-dense stores.
    def split_heads(a):
        return a.reshape(B, T, n_head, Dh).transpose(0, 2, 1, 3)

    q4, k4, v4 = split_heads(q), split_heads(k), split_heads(v)

    # -------------------- kernel 2: flash attention ---------------------------
    y4 = pl.pallas_call(
        _flash_attn_kernel,
        out_shape=jax.ShapeDtypeStruct((B, n_head, T, Dh), bf16),
        grid=(B, nTq, nTk),
        in_specs=[
            pl.BlockSpec((1, n_head, TQ, Dh), lambda b, t, s: (b, 0, t, 0)),
            pl.BlockSpec((1, n_head, TK, Dh), lambda b, t, s: (b, 0, s, 0)),
            pl.BlockSpec((1, n_head, TK, Dh), lambda b, t, s: (b, 0, s, 0)),
        ],
        out_specs=pl.BlockSpec((1, n_head, TQ, Dh), lambda b, t, s: (b, 0, t, 0)),
        scratch_shapes=[
            pltpu.VMEM((n_head, TQ, 1), jnp.float32),    # running max
            pltpu.VMEM((n_head, TQ, 1), jnp.float32),    # running sum
            pltpu.VMEM((n_head, TQ, Dh), jnp.float32),   # output accumulator
        ],
        compiler_params=pltpu.CompilerParams(
            dimension_semantics=("parallel", "parallel", "arbitrary"),
            vmem_limit_bytes=vmem_limit),
    )(q4, k4, v4)

    y = y4.transpose(0, 2, 1, 3).reshape(B, T, C)

    # ------ kernel 3: attn out-proj + residual + LN2 + MLP + residual ---------
    out = pl.pallas_call(
        _proj_mlp_kernel,
        out_shape=jax.ShapeDtypeStruct((B, T, C), f32),
        grid=(B, nTq, nH),
        in_specs=[
            pl.BlockSpec((1, TQ, C), lambda b, t, h: (b, t, 0)),   # x (residual)
            pl.BlockSpec((1, TQ, C), lambda b, t, h: (b, t, 0)),   # y (attention)
            pl.BlockSpec((C, C), lambda b, t, h: (0, 0)),          # w_attn_proj
            pl.BlockSpec((1, C), lambda b, t, h: (0, 0)),          # b_attn_proj
            pl.BlockSpec((1, C), lambda b, t, h: (0, 0)),          # ln2 w
            pl.BlockSpec((1, C), lambda b, t, h: (0, 0)),          # ln2 b
            pl.BlockSpec((C, TH), lambda b, t, h: (0, h)),         # w_fc (N-tiled)
            pl.BlockSpec((1, TH), lambda b, t, h: (0, h)),         # b_fc tile
            pl.BlockSpec((TH, C), lambda b, t, h: (h, 0)),         # w_mlp_proj (K-tiled)
            pl.BlockSpec((1, C), lambda b, t, h: (0, 0)),          # b_mlp_proj
        ],
        out_specs=pl.BlockSpec((1, TQ, C), lambda b, t, h: (b, t, 0)),
        scratch_shapes=[
            pltpu.VMEM((TQ, C), jnp.float32),    # x1 = x + attn projection
            pltpu.VMEM((TQ, C), jnp.bfloat16),   # LN2(x1), reused across hidden tiles
            pltpu.VMEM((TQ, C), jnp.float32),    # MLP accumulator
        ],
        compiler_params=pltpu.CompilerParams(
            dimension_semantics=("parallel", "parallel", "arbitrary"),
            vmem_limit_bytes=vmem_limit),
    )(x, y, w_o, b_o, ln2w, ln2b, w_fc, b_fc, w_mp, b_mp)

    return out


# ----------------------------- pure-JAX reference ----------------------------

def gpt_block_reference(x, params, n_head):
    B, T, C = x.shape
    Dh = C // n_head

    def ln(v, w, b):
        mu = jnp.mean(v, axis=-1, keepdims=True)
        var = jnp.mean((v - mu) ** 2, axis=-1, keepdims=True)
        return (v - mu) / jnp.sqrt(var + 1e-5) * w + b

    h = ln(x, params["ln1_w"], params["ln1_b"])
    qkv = h @ params["w_qkv"] + params["b_qkv"]
    q, k, v = jnp.split(qkv, 3, axis=-1)
    q = q.reshape(B, T, n_head, Dh).transpose(0, 2, 1, 3)
    k = k.reshape(B, T, n_head, Dh).transpose(0, 2, 1, 3)
    v = v.reshape(B, T, n_head, Dh).transpose(0, 2, 1, 3)
    s = jnp.einsum("bhtd,bhsd->bhts", q, k) / math.sqrt(Dh)
    mask = jnp.tril(jnp.ones((T, T), dtype=bool))
    s = jnp.where(mask, s, -1e30)
    p = jax.nn.softmax(s, axis=-1)
    y = jnp.einsum("bhts,bhsd->bhtd", p, v).transpose(0, 2, 1, 3).reshape(B, T, C)
    x1 = x + y @ params["w_attn_proj"] + params["b_attn_proj"]

    h2 = ln(x1, params["ln2_w"], params["ln2_b"])
    fc = h2 @ params["w_fc"] + params["b_fc"]
    g = 0.5 * fc * (1.0 + jnp.tanh(math.sqrt(2.0 / math.pi) * (fc + 0.044715 * fc ** 3)))
    return x1 + g @ params["w_mlp_proj"] + params["b_mlp_proj"]


# ----------------------------------- main ------------------------------------

def _make_params(key, C):
    keys = jax.random.split(key, 12)
    return {
        "ln1_w": 1.0 + 0.1 * jax.random.normal(keys[8], (1, C), jnp.float32),
        "ln1_b": 0.1 * jax.random.normal(keys[9], (1, C), jnp.float32),
        "w_qkv": 0.02 * jax.random.normal(keys[0], (C, 3 * C), jnp.float32),
        "b_qkv": 0.01 * jax.random.normal(keys[1], (1, 3 * C), jnp.float32),
        "w_attn_proj": 0.02 * jax.random.normal(keys[2], (C, C), jnp.float32),
        "b_attn_proj": 0.01 * jax.random.normal(keys[3], (1, C), jnp.float32),
        "ln2_w": 1.0 + 0.1 * jax.random.normal(keys[10], (1, C), jnp.float32),
        "ln2_b": 0.1 * jax.random.normal(keys[11], (1, C), jnp.float32),
        "w_fc": 0.02 * jax.random.normal(keys[4], (C, 4 * C), jnp.float32),
        "b_fc": 0.01 * jax.random.normal(keys[5], (1, 4 * C), jnp.float32),
        "w_mlp_proj": 0.02 * jax.random.normal(keys[6], (4 * C, C), jnp.float32),
        "b_mlp_proj": 0.01 * jax.random.normal(keys[7], (1, C), jnp.float32),
    }


if __name__ == "__main__":
    root = jax.random.PRNGKey(0)

    # (B, T, C, H): first config is the small GPT-like smoke test; the second
    # exercises the multi-tile paths (2 q-tiles, 2 kv-tiles with causal skipping,
    # and 2 MLP hidden tiles accumulated over the reduction grid axis).
    configs = [(2, 8, 32, 4), (2, 256, 256, 4)]
    for idx, (B, T, C, H) in enumerate(configs):
        pkey, xkey = jax.random.split(jax.random.fold_in(root, idx))
        params = _make_params(pkey, C)
        x = jax.random.normal(xkey, (B, T, C), jnp.float32)

        out = jax.block_until_ready(gpt_block_forward(x, params, H))
        with jax.default_matmul_precision("float32"):
            ref = jax.block_until_ready(gpt_block_reference(x, params, H))

        assert out.shape == (B, T, C)
        # bf16 matmul operands with f32 accumulation -> bf16-level tolerance.
        np.testing.assert_allclose(np.asarray(out), np.asarray(ref),
                                   atol=2e-2, rtol=2e-2)

    print("KERNEL_OK")
</pallas_src>

<mosaic_0001>
module attributes {stable_mosaic.version = 11 : i64} {
  func.func @_ln_qkv_kernel(%arg0: i32, %arg1: i32, %arg2: i32, %arg3: memref<1x8x32xf32, #tpu.memory_space<vmem>>, %arg4: memref<1x32xf32, #tpu.memory_space<vmem>>, %arg5: memref<1x32xf32, #tpu.memory_space<vmem>>, %arg6: memref<32x32xbf16, #tpu.memory_space<vmem>>, %arg7: memref<32x32xbf16, #tpu.memory_space<vmem>>, %arg8: memref<32x32xbf16, #tpu.memory_space<vmem>>, %arg9: memref<1x32xf32, #tpu.memory_space<vmem>>, %arg10: memref<1x32xf32, #tpu.memory_space<vmem>>, %arg11: memref<1x32xf32, #tpu.memory_space<vmem>>, %arg12: memref<1x8x32xbf16, #tpu.memory_space<vmem>>, %arg13: memref<1x8x32xbf16, #tpu.memory_space<vmem>>, %arg14: memref<1x8x32xbf16, #tpu.memory_space<vmem>>) attributes {dimension_semantics = [#tpu.dimension_semantics<parallel>, #tpu.dimension_semantics<parallel>, #tpu.dimension_semantics<parallel>], iteration_bounds = array<i64: 2, 1, 1>, scalar_prefetch = 0 : i64, scratch_operands = 0 : i64, tpu.core_type = #tpu.core_type<tc>, window_params = [{transform_indices = @transform_0, window_bounds = array<i64: 1, 8, 32>}, {pipeline_mode = #tpu.pipeline_mode<synchronous>, transform_indices = @transform_1, window_bounds = array<i64: 1, 32>}, {pipeline_mode = #tpu.pipeline_mode<synchronous>, transform_indices = @transform_2, window_bounds = array<i64: 1, 32>}, {transform_indices = @transform_3, window_bounds = array<i64: 32, 32>}, {transform_indices = @transform_4, window_bounds = array<i64: 32, 32>}, {transform_indices = @transform_5, window_bounds = array<i64: 32, 32>}, {transform_indices = @transform_6, window_bounds = array<i64: 1, 32>}, {transform_indices = @transform_7, window_bounds = array<i64: 1, 32>}, {transform_indices = @transform_8, window_bounds = array<i64: 1, 32>}, {transform_indices = @transform_9, window_bounds = array<i64: 1, 8, 32>}, {transform_indices = @transform_10, window_bounds = array<i64: 1, 8, 32>}, {transform_indices = @transform_11, window_bounds = array<i64: 1, 8, 32>}]} {
    %c0 = arith.constant 0 : index
    %c0_0 = arith.constant 0 : index
    %c0_1 = arith.constant 0 : index
    %0 = vector.load %arg3[%c0, %c0_0, %c0_1] : memref<1x8x32xf32, #tpu.memory_space<vmem>>, vector<1x8x32xf32>
    %1 = vector.shape_cast %0 : vector<1x8x32xf32> to vector<8x32xf32>
    %c0_2 = arith.constant 0 : index
    %c0_3 = arith.constant 0 : index
    %2 = vector.load %arg4[%c0_2, %c0_3] : memref<1x32xf32, #tpu.memory_space<vmem>>, vector<1x32xf32>
    %c0_4 = arith.constant 0 : index
    %c0_5 = arith.constant 0 : index
    %3 = vector.load %arg5[%c0_4, %c0_5] : memref<1x32xf32, #tpu.memory_space<vmem>>, vector<1x32xf32>
    %cst = arith.constant dense<0.000000e+00> : vector<8xf32>
    %4 = vector.multi_reduction <add>, %1, %cst [1] : vector<8x32xf32> to vector<8xf32>
    %5 = vector.shape_cast %4 : vector<8xf32> to vector<8x1xf32>
    %cst_6 = arith.constant 3.200000e+01 : f32
    %6 = vector.broadcast %cst_6 : f32 to vector<8x1xf32>
    %7 = arith.divf %5, %6 : vector<8x1xf32>
    %8 = vector.broadcast %7 : vector<8x1xf32> to vector<8x32xf32>
    %9 = arith.subf %1, %8 : vector<8x32xf32>
    %10 = arith.mulf %9, %9 : vector<8x32xf32>
    %cst_7 = arith.constant dense<0.000000e+00> : vector<8xf32>
    %11 = vector.multi_reduction <add>, %10, %cst_7 [1] : vector<8x32xf32> to vector<8xf32>
    %12 = vector.shape_cast %11 : vector<8xf32> to vector<8x1xf32>
    %cst_8 = arith.constant 3.200000e+01 : f32
    %13 = vector.broadcast %cst_8 : f32 to vector<8x1xf32>
    %14 = arith.divf %12, %13 : vector<8x1xf32>
    %15 = vector.broadcast %7 : vector<8x1xf32> to vector<8x32xf32>
    %16 = arith.subf %1, %15 : vector<8x32xf32>
    %cst_9 = arith.constant 9.99999974E-6 : f32
    %17 = vector.broadcast %cst_9 : f32 to vector<8x1xf32>
    %18 = arith.addf %14, %17 : vector<8x1xf32>
    %19 = math.rsqrt %18 : vector<8x1xf32>
    %20 = vector.broadcast %19 : vector<8x1xf32> to vector<8x32xf32>
    %21 = arith.mulf %16, %20 : vector<8x32xf32>
    %22 = vector.broadcast %2 : vector<1x32xf32> to vector<8x32xf32>
    %23 = arith.mulf %21, %22 : vector<8x32xf32>
    %24 = vector.broadcast %3 : vector<1x32xf32> to vector<8x32xf32>
    %25 = arith.addf %23, %24 : vector<8x32xf32>
    %26 = arith.truncf %25 : vector<8x32xf32> to vector<8x32xbf16>
    %c0_10 = arith.constant 0 : index
    %c0_11 = arith.constant 0 : index
    %27 = vector.load %arg6[%c0_10, %c0_11] : memref<32x32xbf16, #tpu.memory_space<vmem>>, vector<32x32xbf16>
    %cst_12 = arith.constant dense<0.000000e+00> : vector<8x32xf32>
    %28 = tpu.matmul %26, %27, %cst_12 {dimension_numbers = #tpu.dot_dimension_numbers<[1], [0], [0], [1], [0, 0, 1, 1], [], []>} : vector<8x32xbf16>, vector<32x32xbf16>, vector<8x32xf32> -> vector<8x32xf32>
    %c0_13 = arith.constant 0 : index
    %c0_14 = arith.constant 0 : index
    %29 = vector.load %arg9[%c0_13, %c0_14] : memref<1x32xf32, #tpu.memory_space<vmem>>, vector<1x32xf32>
    %30 = vector.broadcast %29 : vector<1x32xf32> to vector<8x32xf32>
    %31 = arith.addf %28, %30 : vector<8x32xf32>
    %32 = arith.truncf %31 : vector<8x32xf32> to vector<8x32xbf16>
    %c0_15 = arith.constant 0 : index
    %c0_16 = arith.constant 0 : index
    %c0_17 = arith.constant 0 : index
    %33 = vector.load %arg12[%c0_15, %c0_16, %c0_17] : memref<1x8x32xbf16, #tpu.memory_space<vmem>>, vector<1x8x32xbf16>
    %34 = vector.shape_cast %33 : vector<1x8x32xbf16> to vector<8x32xbf16>
    %35 = vector.shape_cast %32 : vector<8x32xbf16> to vector<1x8x32xbf16>
    tpu.vector_store %arg12[%c0_15, %c0_16, %c0_17], %35 {strides = array<i32>} : memref<1x8x32xbf16, #tpu.memory_space<vmem>>, vector<1x8x32xbf16>,
    %c0_18 = arith.constant 0 : index
    %c0_19 = arith.constant 0 : index
    %36 = vector.load %arg7[%c0_18, %c0_19] : memref<32x32xbf16, #tpu.memory_space<vmem>>, vector<32x32xbf16>
    %cst_20 = arith.constant dense<0.000000e+00> : vector<8x32xf32>
    %37 = tpu.matmul %26, %36, %cst_20 {dimension_numbers = #tpu.dot_dimension_numbers<[1], [0], [0], [1], [0, 0, 1, 1], [], []>} : vector<8x32xbf16>, vector<32x32xbf16>, vector<8x32xf32> -> vector<8x32xf32>
    %c0_21 = arith.constant 0 : index
    %c0_22 = arith.constant 0 : index
    %38 = vector.load %arg10[%c0_21, %c0_22] : memref<1x32xf32, #tpu.memory_space<vmem>>, vector<1x32xf32>
    %39 = vector.broadcast %38 : vector<1x32xf32> to vector<8x32xf32>
    %40 = arith.addf %37, %39 : vector<8x32xf32>
    %41 = arith.truncf %40 : vector<8x32xf32> to vector<8x32xbf16>
    %c0_23 = arith.constant 0 : index
    %c0_24 = arith.constant 0 : index
    %c0_25 = arith.constant 0 : index
    %42 = vector.load %arg13[%c0_23, %c0_24, %c0_25] : memref<1x8x32xbf16, #tpu.memory_space<vmem>>, vector<1x8x32xbf16>
    %43 = vector.shape_cast %42 : vector<1x8x32xbf16> to vector<8x32xbf16>
    %44 = vector.shape_cast %41 : vector<8x32xbf16> to vector<1x8x32xbf16>
    tpu.vector_store %arg13[%c0_23, %c0_24, %c0_25], %44 {strides = array<i32>} : memref<1x8x32xbf16, #tpu.memory_space<vmem>>, vector<1x8x32xbf16>,
    %c0_26 = arith.constant 0 : index
    %c0_27 = arith.constant 0 : index
    %45 = vector.load %arg8[%c0_26, %c0_27] : memref<32x32xbf16, #tpu.memory_space<vmem>>, vector<32x32xbf16>
    %cst_28 = arith.constant dense<0.000000e+00> : vector<8x32xf32>
    %46 = tpu.matmul %26, %45, %cst_28 {dimension_numbers = #tpu.dot_dimension_numbers<[1], [0], [0], [1], [0, 0, 1, 1], [], []>} : vector<8x32xbf16>, vector<32x32xbf16>, vector<8x32xf32> -> vector<8x32xf32>
    %c0_29 = arith.constant 0 : index
    %c0_30 = arith.constant 0 : index
    %47 = vector.load %arg11[%c0_29, %c0_30] : memref<1x32xf32, #tpu.memory_space<vmem>>, vector<1x32xf32>
    %48 = vector.broadcast %47 : vector<1x32xf32> to vector<8x32xf32>
    %49 = arith.addf %46, %48 : vector<8x32xf32>
    %50 = arith.truncf %49 : vector<8x32xf32> to vector<8x32xbf16>
    %c0_31 = arith.constant 0 : index
    %c0_32 = arith.constant 0 : index
    %c0_33 = arith.constant 0 : index
    %51 = vector.load %arg14[%c0_31, %c0_32, %c0_33] : memref<1x8x32xbf16, #tpu.memory_space<vmem>>, vector<1x8x32xbf16>
    %52 = vector.shape_cast %51 : vector<1x8x32xbf16> to vector<8x32xbf16>
    %53 = vector.shape_cast %50 : vector<8x32xbf16> to vector<1x8x32xbf16>
    tpu.vector_store %arg14[%c0_31, %c0_32, %c0_33], %53 {strides = array<i32>} : memref<1x8x32xbf16, #tpu.memory_space<vmem>>, vector<1x8x32xbf16>,
    return
  }
  func.func @transform_0(%arg0: i32, %arg1: i32, %arg2: i32) -> (i32, i32, i32) {
    %c0_i32 = arith.constant 0 : i32
    %c0_i32_0 = arith.constant 0 : i32
    return %arg0, %arg1, %c0_i32 : i32, i32, i32
  }
  func.func @transform_1(%arg0: i32, %arg1: i32, %arg2: i32) -> (i32, i32) {
    %c0_i32 = arith.constant 0 : i32
    %c0_i32_0 = arith.constant 0 : i32
    %c0_i32_1 = arith.constant 0 : i32
    return %c0_i32, %c0_i32_0 : i32, i32
  }
  func.func @transform_2(%arg0: i32, %arg1: i32, %arg2: i32) -> (i32, i32) {
    %c0_i32 = arith.constant 0 : i32
    %c0_i32_0 = arith.constant 0 : i32
    %c0_i32_1 = arith.constant 0 : i32
    return %c0_i32, %c0_i32_0 : i32, i32
  }
  func.func @transform_3(%arg0: i32, %arg1: i32, %arg2: i32) -> (i32, i32) {
    %c0_i32 = arith.constant 0 : i32
    %c0_i32_0 = arith.constant 0 : i32
    return %c0_i32, %arg2 : i32, i32
  }
  func.func @transform_4(%arg0: i32, %arg1: i32, %arg2: i32) -> (i32, i32) {
    %c0_i32 = arith.constant 0 : i32
    %c0_i32_0 = arith.constant 0 : i32
    return %c0_i32, %arg2 : i32, i32
  }
  func.func @transform_5(%arg0: i32, %arg1: i32, %arg2: i32) -> (i32, i32) {
    %c0_i32 = arith.constant 0 : i32
    %c0_i32_0 = arith.constant 0 : i32
    return %c0_i32, %arg2 : i32, i32
  }
  func.func @transform_6(%arg0: i32, %arg1: i32, %arg2: i32) -> (i32, i32) {
    %c0_i32 = arith.constant 0 : i32
    %c0_i32_0 = arith.constant 0 : i32
    return %c0_i32, %arg2 : i32, i32
  }
  func.func @transform_7(%arg0: i32, %arg1: i32, %arg2: i32) -> (i32, i32) {
    %c0_i32 = arith.constant 0 : i32
    %c0_i32_0 = arith.constant 0 : i32
    return %c0_i32, %arg2 : i32, i32
  }
  func.func @transform_8(%arg0: i32, %arg1: i32, %arg2: i32) -> (i32, i32) {
    %c0_i32 = arith.constant 0 : i32
    %c0_i32_0 = arith.constant 0 : i32
    return %c0_i32, %arg2 : i32, i32
  }
  func.func @transform_9(%arg0: i32, %arg1: i32, %arg2: i32) -> (i32, i32, i32) {
    %c0_i32 = arith.constant 0 : i32
    return %arg0, %arg1, %arg2 : i32, i32, i32
  }
  func.func @transform_10(%arg0: i32, %arg1: i32, %arg2: i32) -> (i32, i32, i32) {
    %c0_i32 = arith.constant 0 : i32
    return %arg0, %arg1, %arg2 : i32, i32, i32
  }
  func.func @transform_11(%arg0: i32, %arg1: i32, %arg2: i32) -> (i32, i32, i32) {
    %c0_i32 = arith.constant 0 : i32
    return %arg0, %arg1, %arg2 : i32, i32, i32
  }
}

</mosaic_0001>

<llo_original>
// kernel: tpu_custom_call.1
$region0: #{tpu_custom_call.1}
  #allocation0 [shape = 'u32[]', space=smem, size = 0x4, offset = 0x4, fixed_abs, tag = 'smem constant byte address 0x4 - core index']
  #allocation1 [shape = 'u32[144,128]{1,0:T(1,128)}', space=vmem, size = 0x12000, scoped, tag = 'internal scratch']
  %s0 = inlined_call_operand.hbm [shape: f32[2,8,32], index: 0, kind: input, shape index: {}]
  %s1 = inlined_call_operand.vmem [shape: f32[1,32], index: 1, kind: input, shape index: {}]
  %s2 = inlined_call_operand.vmem [shape: f32[1,32], index: 2, kind: input, shape index: {}]
  %s3 = inlined_call_operand.hbm [shape: bf16[32,32], index: 3, kind: input, shape index: {}]
  %s4 = inlined_call_operand.hbm [shape: bf16[32,32], index: 4, kind: input, shape index: {}]
  %s5 = inlined_call_operand.vmem [shape: bf16[32,32], index: 5, kind: input, shape index: {}]
  %s6 = inlined_call_operand.vmem [shape: f32[1,32], index: 6, kind: input, shape index: {}]
  %s7 = inlined_call_operand.vmem [shape: f32[1,32], index: 7, kind: input, shape index: {}]
  %s8 = inlined_call_operand.vmem [shape: f32[1,32], index: 8, kind: input, shape index: {}]
  %s9 = inlined_call_operand.hbm [shape: bf16[2,8,32], index: 9, kind: output, shape index: {0}]
  %s10 = inlined_call_operand.hbm [shape: bf16[2,8,32], index: 10, kind: output, shape index: {1}]
  %s11 = inlined_call_operand.hbm [shape: bf16[2,8,32], index: 11, kind: output, shape index: {2}]
  %12 = xla_tuple %s9, %s10, %s11
  %s13 = sld [smem:[#allocation0]]
  $region97: #{tpu_custom_call.1} parent=0
    _
  %s15 = ssub.s32 1, %s13
  %s16 = scalar_select 0, %s15, %s13
  $region1: #{tpu_custom_call.1} parent=0
    #allocation2 [shape = 'u8[8192]{0}', space=vmem, size = 0x2000, scoped, tag = 'input window, operand 0']
    #allocation3 [shape = 's32[2]{0}', space=sflag, size = 0x8, scoped, tag = 'scoped memory for tpu_custom_call.1']
    #allocation4 [shape = 's32[2]{0}', space=sflag, size = 0x8, scoped, tag = 'scoped memory for tpu_custom_call.1']
    #allocation5 [shape = 'u8[8192]{0}', space=vmem, size = 0x2000, scoped, tag = 'input window, operand 3, single buffered']
    #allocation6 [shape = 's32[1]{0}', space=sflag, size = 0x4, scoped, tag = 'scoped memory for tpu_custom_call.1']
    #allocation7 [shape = 'u8[8192]{0}', space=vmem, size = 0x2000, scoped, tag = 'input window, operand 4, single buffered']
    #allocation8 [shape = 'u8[4096]{0}', space=vmem, size = 0x1000, scoped, tag = 'output window, operand 0']
    #allocation9 [shape = 'u8[4096]{0}', space=vmem, size = 0x1000, scoped, tag = 'output window, operand 1']
    #allocation10 [shape = 's32[2]{0}', space=sflag, size = 0x8, scoped, tag = 'scoped memory for tpu_custom_call.1']
    #allocation11 [shape = 'u8[4096]{0}', space=vmem, size = 0x1000, scoped, tag = 'output window, operand 2']
    %17 = vsyncpa [#allocation3], 0
    %s18 = scalar_lea.sflag [#allocation3], 1
    %19 = vsyncpa %s18, 0
    %20 = vsyncpa [#allocation6], 0
    %21 = vsyncpa [#allocation4], 0
    %s22 = scalar_lea.sflag [#allocation4], 1
    %23 = vsyncpa %s22, 0
    %24 = vsyncpa [#allocation10], 0
    %s25 = scalar_lea.sflag [#allocation10], 1
    %26 = vsyncpa %s25, 0
    loop: start=0, step=1, limit=4
    $region2: #{tpu_custom_call.1} parent=1 // loop_pre_header
      _
    $region3: #{tpu_custom_call.1} parent=1 // loop_header
      %s28 = sphi 0, %s32
      %p29 = scmp.ge.s32.totalorder %s28, 4
      %s35 = sphi 0, %s54
      %s36 = sphi 0, %s50
      %s37 = sphi 0, %s46
      %s38 = sphi 0, %s35
      %s39 = sphi 0, %s36
      %s40 = sphi 0, %s37
      %s41 = sphi 0, %s38
      %s42 = sphi 0, %s39
      %s43 = sphi 0, %s40
      %s59 = sphi 0, %s61
      %s62 = sphi 0, %s59
      %s63 = sphi 0, %s62
      %s79 = sphi 0, %s63
      %s83 = sphi 0, %s83
      %s85 = sphi 0, %s83
      %s86 = sphi 0, %s85
      %s100 = sphi 0, %s86
      %s104 = sphi 0, %s104
      %s106 = sphi 0, %s104
      %s107 = sphi 0, %s106
      %s121 = sphi 0, %s107
      %s127 = sphi 0, %s129
      %s130 = sphi 0, %s127
      %s131 = sphi 0, %s130
      %s147 = sphi 0, %s131
      %s153 = sphi 0, %s155
      %s156 = sphi 0, %s153
      %s157 = sphi 0, %s156
      %s173 = sphi 0, %s157
      %s179 = sphi 0, %s181
      %s182 = sphi 0, %s179
      %s183 = sphi 0, %s182
      %s199 = sphi 0, %s183
      %s205 = sphi 0, %s207
      %s208 = sphi 0, %s205
      %s209 = sphi 0, %s208
      %s225 = sphi 0, %s209
      %s231 = sphi 0, %s233
      %s234 = sphi 0, %s231
      %s235 = sphi 0, %s234
      %s251 = sphi 0, %s235
      %s257 = sphi 0, %s259
      %s260 = sphi 0, %s257
      %s261 = sphi 0, %s260
      %s277 = sphi 0, %s261
      %s287 = sphi 0, %s289
      %s290 = sphi 0, %s287
      %s291 = sphi 0, %s290
      %s307 = sphi 0, %s291
      %s317 = sphi 0, %s319
      %s320 = sphi 0, %s317
      %s321 = sphi 0, %s320
      %s337 = sphi 0, %s321
      %s347 = sphi 0, %s349
      %s350 = sphi 0, %s347
      %s351 = sphi 0, %s350
      %s367 = sphi 0, %s351
    $region4: #{tpu_custom_call.1} parent=1 // loop_header_branch
      %31 = sbr.rel (%p29) target = $region8
    $region5: #{tpu_custom_call.1} parent=1 // loop_body
      %s33 = ssub.s32 %s28, 1
      %s34 = ssub.s32 %s28, 2
      %s44 = sadd.s32 1, %s37
      %p45 = scmp.ge.s32.totalorder %s44, 1
      %s46 = scalar_select %p45, 0, %s44
      %s47 = sadd.s32 1, %s36
      %s48 = scalar_select %p45, %s47, %s36
      %p49 = scmp.ge.s32.totalorder %s48, 1
      %s50 = scalar_select %p49, 0, %s48
      %s51 = sadd.s32 1, %s35
      %s52 = scalar_select %p49, %s51, %s35
      %p53 = scmp.ge.s32.totalorder %s52, 2
      %s54 = scalar_select %p53, 0, %s52
      %s55 = ssub.s32 %s35, %s54
      %s56 = ssub.s32 %s36, %s50
      %s57 = sor.u32 %s55, %s56
      %p58 = scmp.eq.s32.totalorder %s57, 0
      %s60 = sadd.s32 %s59, 1
      %s61 = scalar_select %p58, %s59, %s60
      %p64 = pneg %p58
      %p65 = scmp.eq.s32.totalorder %s28, 1
      %p66 = por %p64, %p65
      %p67 = scmp.ne.s32.totalorder %s59, %s62
      %p68 = scmp.eq.s32.totalorder %s28, 0
      %p69 = por %p67, %p68
      %p70 = scmp.ne.s32.totalorder %s59, %s62
      %p71 = scmp.eq.s32.totalorder %s33, 1
      %p72 = por %p70, %p71
      %p73 = scmp.ne.s32.totalorder %s62, %s63
      %p74 = scmp.eq.s32.totalorder %s33, 0
      %p75 = por %p73, %p74
      %p76 = scmp.ne.s32.totalorder %s62, %s63
      %p77 = scmp.eq.s32.totalorder %s34, 1
      %p78 = por %p76, %p77
      %p80 = scmp.ne.s32.totalorder %s63, %s79
      %p81 = scmp.eq.s32.totalorder %s34, 0
      %p82 = por %p80, %p81
      %s84 = sadd.s32 %s83, 1
      %p87 = scmp.eq.s32.totalorder %s28, 1
      %p88 = scmp.ne.s32.totalorder %s83, %s85
      %p89 = scmp.eq.s32.totalorder %s28, 0
      %p90 = por %p88, %p89
      %p91 = scmp.ne.s32.totalorder %s83, %s85
      %p92 = scmp.eq.s32.totalorder %s33, 1
      %p93 = por %p91, %p92
      %p94 = scmp.ne.s32.totalorder %s85, %s86
      %p95 = scmp.eq.s32.totalorder %s33, 0
      %p96 = por %p94, %p95
      %p97 = scmp.ne.s32.totalorder %s85, %s86
      %p98 = scmp.eq.s32.totalorder %s34, 1
      %p99 = por %p97, %p98
      %p101 = scmp.ne.s32.totalorder %s86, %s100
      %p102 = scmp.eq.s32.totalorder %s34, 0
      %p103 = por %p101, %p102
      %s105 = sadd.s32 %s104, 1
      %p108 = scmp.eq.s32.totalorder %s28, 1
      %p109 = scmp.ne.s32.totalorder %s104, %s106
      %p110 = scmp.eq.s32.totalorder %s28, 0
      %p111 = por %p109, %p110
      %p112 = scmp.ne.s32.totalorder %s104, %s106
      %p113 = scmp.eq.s32.totalorder %s33, 1
      %p114 = por %p112, %p113
      %p115 = scmp.ne.s32.totalorder %s106, %s107
      %p116 = scmp.eq.s32.totalorder %s33, 0
      %p117 = por %p115, %p116
      %p118 = scmp.ne.s32.totalorder %s106, %s107
      %p119 = scmp.eq.s32.totalorder %s34, 1
      %p120 = por %p118, %p119
      %p122 = scmp.ne.s32.totalorder %s107, %s121
      %p123 = scmp.eq.s32.totalorder %s34, 0
      %p124 = por %p122, %p123
      %s125 = ssub.s32 %s37, %s46
      %p126 = scmp.eq.s32.totalorder %s125, 0
      %s128 = sadd.s32 %s127, 1
      %s129 = scalar_select %p126, %s127, %s128
      %p132 = pneg %p126
      %p133 = scmp.eq.s32.totalorder %s28, 1
      %p134 = por %p132, %p133
      %p135 = scmp.ne.s32.totalorder %s127, %s130
      %p136 = scmp.eq.s32.totalorder %s28, 0
      %p137 = por %p135, %p136
      %p138 = scmp.ne.s32.totalorder %s127, %s130
      %p139 = scmp.eq.s32.totalorder %s33, 1
      %p140 = por %p138, %p139
      %p141 = scmp.ne.s32.totalorder %s130, %s131
      %p142 = scmp.eq.s32.totalorder %s33, 0
      %p143 = por %p141, %p142
      %p144 = scmp.ne.s32.totalorder %s130, %s131
      %p145 = scmp.eq.s32.totalorder %s34, 1
      %p146 = por %p144, %p145
      %p148 = scmp.ne.s32.totalorder %s131, %s147
      %p149 = scmp.eq.s32.totalorder %s34, 0
      %p150 = por %p148, %p149
      %s151 = ssub.s32 %s37, %s46
      %p152 = scmp.eq.s32.totalorder %s151, 0
      %s154 = sadd.s32 %s153, 1
      %s155 = scalar_select %p152, %s153, %s154
      %p158 = pneg %p152
      %p159 = scmp.eq.s32.totalorder %s28, 1
      %p160 = por %p158, %p159
      %p161 = scmp.ne.s32.totalorder %s153, %s156
      %p162 = scmp.eq.s32.totalorder %s28, 0
      %p163 = por %p161, %p162
      %p164 = scmp.ne.s32.totalorder %s153, %s156
      %p165 = scmp.eq.s32.totalorder %s33, 1
      %p166 = por %p164, %p165
      %p167 = scmp.ne.s32.totalorder %s156, %s157
      %p168 = scmp.eq.s32.totalorder %s33, 0
      %p169 = por %p167, %p168
      %p170 = scmp.ne.s32.totalorder %s156, %s157
      %p171 = scmp.eq.s32.totalorder %s34, 1
      %p172 = por %p170, %p171
      %p174 = scmp.ne.s32.totalorder %s157, %s173
      %p175 = scmp.eq.s32.totalorder %s34, 0
      %p176 = por %p174, %p175
      %s177 = ssub.s32 %s37, %s46
      %p178 = scmp.eq.s32.totalorder %s177, 0
      %s180 = sadd.s32 %s179, 1
      %s181 = scalar_select %p178, %s179, %s180
      %p184 = pneg %p178
      %p185 = scmp.eq.s32.totalorder %s28, 1
      %p186 = por %p184, %p185
      %p187 = scmp.ne.s32.totalorder %s179, %s182
      %p188 = scmp.eq.s32.totalorder %s28, 0
      %p189 = por %p187, %p188
      %p190 = scmp.ne.s32.totalorder %s179, %s182
      %p191 = scmp.eq.s32.totalorder %s33, 1
      %p192 = por %p190, %p191
      %p193 = scmp.ne.s32.totalorder %s182, %s183
      %p194 = scmp.eq.s32.totalorder %s33, 0
      %p195 = por %p193, %p194
      %p196 = scmp.ne.s32.totalorder %s182, %s183
      %p197 = scmp.eq.s32.totalorder %s34, 1
      %p198 = por %p196, %p197
      %p200 = scmp.ne.s32.totalorder %s183, %s199
      %p201 = scmp.eq.s32.totalorder %s34, 0
      %p202 = por %p200, %p201
      %s203 = ssub.s32 %s37, %s46
      %p204 = scmp.eq.s32.totalorder %s203, 0
      %s206 = sadd.s32 %s205, 1
      %s207 = scalar_select %p204, %s205, %s206
      %p210 = pneg %p204
      %p211 = scmp.eq.s32.totalorder %s28, 1
      %p212 = por %p210, %p211
      %p213 = scmp.ne.s32.totalorder %s205, %s208
      %p214 = scmp.eq.s32.totalorder %s28, 0
      %p215 = por %p213, %p214
      %p216 = scmp.ne.s32.totalorder %s205, %s208
      %p217 = scmp.eq.s32.totalorder %s33, 1
      %p218 = por %p216, %p217
      %p219 = scmp.ne.s32.totalorder %s208, %s209
      %p220 = scmp.eq.s32.totalorder %s33, 0
      %p221 = por %p219, %p220
      %p222 = scmp.ne.s32.totalorder %s208, %s209
      %p223 = scmp.eq.s32.totalorder %s34, 1
      %p224 = por %p222, %p223
      %p226 = scmp.ne.s32.totalorder %s209, %s225
      %p227 = scmp.eq.s32.totalorder %s34, 0
      %p228 = por %p226, %p227
      %s229 = ssub.s32 %s37, %s46
      %p230 = scmp.eq.s32.totalorder %s229, 0
      %s232 = sadd.s32 %s231, 1
      %s233 = scalar_select %p230, %s231, %s232
      %p236 = pneg %p230
      %p237 = scmp.eq.s32.totalorder %s28, 1
      %p238 = por %p236, %p237
      %p239 = scmp.ne.s32.totalorder %s231, %s234
      %p240 = scmp.eq.s32.totalorder %s28, 0
      %p241 = por %p239, %p240
      %p242 = scmp.ne.s32.totalorder %s231, %s234
      %p243 = scmp.eq.s32.totalorder %s33, 1
      %p244 = por %p242, %p243
      %p245 = scmp.ne.s32.totalorder %s234, %s235
      %p246 = scmp.eq.s32.totalorder %s33, 0
      %p247 = por %p245, %p246
      %p248 = scmp.ne.s32.totalorder %s234, %s235
      %p249 = scmp.eq.s32.totalorder %s34, 1
      %p250 = por %p248, %p249
      %p252 = scmp.ne.s32.totalorder %s235, %s251
      %p253 = scmp.eq.s32.totalorder %s34, 0
      %p254 = por %p252, %p253
      %s255 = ssub.s32 %s37, %s46
      %p256 = scmp.eq.s32.totalorder %s255, 0
      %s258 = sadd.s32 %s257, 1
      %s259 = scalar_select %p256, %s257, %s258
      %p262 = pneg %p256
      %p263 = scmp.eq.s32.totalorder %s28, 1
      %p264 = por %p262, %p263
      %p265 = scmp.ne.s32.totalorder %s257, %s260
      %p266 = scmp.eq.s32.totalorder %s28, 0
      %p267 = por %p265, %p266
      %p268 = scmp.ne.s32.totalorder %s257, %s260
      %p269 = scmp.eq.s32.totalorder %s33, 1
      %p270 = por %p268, %p269
      %p271 = scmp.ne.s32.totalorder %s260, %s261
      %p272 = scmp.eq.s32.totalorder %s33, 0
      %p273 = por %p271, %p272
      %p274 = scmp.ne.s32.totalorder %s260, %s261
      %p275 = scmp.eq.s32.totalorder %s34, 1
      %p276 = por %p274, %p275
      %p278 = scmp.ne.s32.totalorder %s261, %s277
      %p279 = scmp.eq.s32.totalorder %s34, 0
      %p280 = por %p278, %p279
      %s281 = ssub.s32 %s35, %s54
      %s282 = ssub.s32 %s36, %s50
      %s283 = sor.u32 %s281, %s282
      %s284 = ssub.s32 %s37, %s46
      %s285 = sor.u32 %s283, %s284
      %p286 = scmp.eq.s32.totalorder %s285, 0
      %s288 = sadd.s32 %s287, 1
      %s289 = scalar_select %p286, %s287, %s288
      %p292 = pneg %p286
      %p293 = scmp.eq.s32.totalorder %s28, 1
      %p294 = por %p292, %p293
      %p295 = scmp.ne.s32.totalorder %s287, %s290
      %p296 = scmp.eq.s32.totalorder %s28, 0
      %p297 = por %p295, %p296
      %p298 = scmp.ne.s32.totalorder %s287, %s290
      %p299 = scmp.eq.s32.totalorder %s33, 1
      %p300 = por %p298, %p299
      %p301 = scmp.ne.s32.totalorder %s290, %s291
      %p302 = scmp.eq.s32.totalorder %s33, 0
      %p303 = por %p301, %p302
      %p304 = scmp.ne.s32.totalorder %s290, %s291
      %p305 = scmp.eq.s32.totalorder %s34, 1
      %p306 = por %p304, %p305
      %p308 = scmp.ne.s32.totalorder %s291, %s307
      %p309 = scmp.eq.s32.totalorder %s34, 0
      %p310 = por %p308, %p309
      %s311 = ssub.s32 %s35, %s54
      %s312 = ssub.s32 %s36, %s50
      %s313 = sor.u32 %s311, %s312
      %s314 = ssub.s32 %s37, %s46
      %s315 = sor.u32 %s313, %s314
      %p316 = scmp.eq.s32.totalorder %s315, 0
      %s318 = sadd.s32 %s317, 1
      %s319 = scalar_select %p316, %s317, %s318
      %p322 = pneg %p316
      %p323 = scmp.eq.s32.totalorder %s28, 1
      %p324 = por %p322, %p323
      %p325 = scmp.ne.s32.totalorder %s317, %s320
      %p326 = scmp.eq.s32.totalorder %s28, 0
      %p327 = por %p325, %p326
      %p328 = scmp.ne.s32.totalorder %s317, %s320
      %p329 = scmp.eq.s32.totalorder %s33, 1
      %p330 = por %p328, %p329
      %p331 = scmp.ne.s32.totalorder %s320, %s321
      %p332 = scmp.eq.s32.totalorder %s33, 0
      %p333 = por %p331, %p332
      %p334 = scmp.ne.s32.totalorder %s320, %s321
      %p335 = scmp.eq.s32.totalorder %s34, 1
      %p336 = por %p334, %p335
      %p338 = scmp.ne.s32.totalorder %s321, %s337
      %p339 = scmp.eq.s32.totalorder %s34, 0
      %p340 = por %p338, %p339
      %s341 = ssub.s32 %s35, %s54
      %s342 = ssub.s32 %s36, %s50
      %s343 = sor.u32 %s341, %s342
      %s344 = ssub.s32 %s37, %s46
      %s345 = sor.u32 %s343, %s344
      %p346 = scmp.eq.s32.totalorder %s345, 0
      %s348 = sadd.s32 %s347, 1
      %s349 = scalar_select %p346, %s347, %s348
      %p352 = pneg %p346
      %p353 = scmp.eq.s32.totalorder %s28, 1
      %p354 = por %p352, %p353
      %p355 = scmp.ne.s32.totalorder %s347, %s350
      %p356 = scmp.eq.s32.totalorder %s28, 0
      %p357 = por %p355, %p356
      %p358 = scmp.ne.s32.totalorder %s347, %s350
      %p359 = scmp.eq.s32.totalorder %s33, 1
      %p360 = por %p358, %p359
      %p361 = scmp.ne.s32.totalorder %s350, %s351
      %p362 = scmp.eq.s32.totalorder %s33, 0
      %p363 = por %p361, %p362
      %p364 = scmp.ne.s32.totalorder %s350, %s351
      %p365 = scmp.eq.s32.totalorder %s34, 1
      %p366 = por %p364, %p365
      %p368 = scmp.ne.s32.totalorder %s351, %s367
      %p369 = scmp.eq.s32.totalorder %s34, 0
      %p370 = por %p368, %p369
      %p371 = scmp.le.s32.totalorder 1, %s28
      %p372 = scmp.lt.s32.totalorder %s28, 3
      %p373 = pnand %p371, %p372
      %p374 = pneg %p373
      // Predicated region
      $region9: #{tpu_custom_call.1} parent=5 // pred_check
        _
      $region10: #{tpu_custom_call.1} parent=5 // pred_check_branch
        %376 = sbr.rel (%p373) target = $region12
      $region11: #{tpu_custom_call.1} parent=5 // pred_region
        %s377 = ssub.s32 %s28, 1
        // Predicated region
        $region13: #{tpu_custom_call.1} parent=11 // pred_check
          %p378 = pneg %p96
        $region14: #{tpu_custom_call.1} parent=11 // pred_check_branch
          %380 = sbr.rel (%p378) target = $region16
        $region15: #{tpu_custom_call.1} parent=11 // pred_region
          _
        $region16: #{tpu_custom_call.1} parent=11 // pred_fallthru
          _
        // Predicated region
        $region17: #{tpu_custom_call.1} parent=11 // pred_check
          %p381 = pneg %p117
        $region18: #{tpu_custom_call.1} parent=11 // pred_check_branch
          %383 = sbr.rel (%p381) target = $region20
        $region19: #{tpu_custom_call.1} parent=11 // pred_region
          _
        $region20: #{tpu_custom_call.1} parent=11 // pred_fallthru
          _
        // Predicated region
        $region21: #{tpu_custom_call.1} parent=11 // pred_check
          %p384 = pneg %p143
        $region22: #{tpu_custom_call.1} parent=11 // pred_check_branch
          %386 = sbr.rel (%p384) target = $region24
        $region23: #{tpu_custom_call.1} parent=11 // pred_region
          %s388 = ssub.s32 256, 256
          %389 = vsyncadd [#allocation6], %s388
          %s390 = smul.addr %s40, 64
          %s391 = scalar_lea.hbm %s3, %s390
          %s392 = sshll.u32 [#allocation5], 4
          %s393 = int_to_ptr.vmem [resolvable:$true] %s392
          %398 = dma.hbm_to_vmem [thread:$0]  %s391, 256, %s393, [#allocation6], 64, 64, 4
        $region24: #{tpu_custom_call.1} parent=11 // pred_fallthru
          _
        // Predicated region
        $region25: #{tpu_custom_call.1} parent=11 // pred_check
          %p399 = pneg %p169
        $region26: #{tpu_custom_call.1} parent=11 // pred_check_branch
          %401 = sbr.rel (%p399) target = $region28
        $region27: #{tpu_custom_call.1} parent=11 // pred_region
          %s403 = ssub.s32 256, 256
          %404 = vsyncadd [#allocation6], %s403
          %s405 = smul.addr %s40, 64
          %s406 = scalar_lea.hbm %s4, %s405
          %s407 = sshll.u32 [#allocation7], 4
          %s408 = int_to_ptr.vmem [resolvable:$true] %s407
          %413 = dma.hbm_to_vmem [thread:$0]  %s406, 256, %s408, [#allocation6], 64, 64, 4
        $region28: #{tpu_custom_call.1} parent=11 // pred_fallthru
          _
        // Predicated region
        $region29: #{tpu_custom_call.1} parent=11 // pred_check
          %p414 = pneg %p195
        $region30: #{tpu_custom_call.1} parent=11 // pred_check_branch
          %416 = sbr.rel (%p414) target = $region32
        $region31: #{tpu_custom_call.1} parent=11 // pred_region
          %p417 = scmp.lt.s32.totalorder %s40, 0
          %s418 = scalar_select %p417, %s40, 0
          %s419 = smul.addr %s418, 4
          %s420 = scalar_lea.vmem %s5, %s419
        $region32: #{tpu_custom_call.1} parent=11 // pred_fallthru
          _
        // Predicated region
        $region33: #{tpu_custom_call.1} parent=11 // pred_check
          %p421 = pneg %p221
        $region34: #{tpu_custom_call.1} parent=11 // pred_check_branch
          %423 = sbr.rel (%p421) target = $region36
        $region35: #{tpu_custom_call.1} parent=11 // pred_region
          %p424 = scmp.lt.s32.totalorder %s40, 0
          %s425 = scalar_select %p424, %s40, 0
          %s426 = scalar_lea.vmem %s6, %s425
        $region36: #{tpu_custom_call.1} parent=11 // pred_fallthru
          _
        // Predicated region
        $region37: #{tpu_custom_call.1} parent=11 // pred_check
          %p427 = pneg %p247
        $region38: #{tpu_custom_call.1} parent=11 // pred_check_branch
          %429 = sbr.rel (%p427) target = $region40
        $region39: #{tpu_custom_call.1} parent=11 // pred_region
          %p430 = scmp.lt.s32.totalorder %s40, 0
          %s431 = scalar_select %p430, %s40, 0
          %s432 = scalar_lea.vmem %s7, %s431
        $region40: #{tpu_custom_call.1} parent=11 // pred_fallthru
          _
        // Predicated region
        $region41: #{tpu_custom_call.1} parent=11 // pred_check
          %p433 = pneg %p273
        $region42: #{tpu_custom_call.1} parent=11 // pred_check_branch
          %435 = sbr.rel (%p433) target = $region44
        $region43: #{tpu_custom_call.1} parent=11 // pred_region
          %p436 = scmp.lt.s32.totalorder %s40, 0
          %s437 = scalar_select %p436, %s40, 0
          %s438 = scalar_lea.vmem %s8, %s437
        $region44: #{tpu_custom_call.1} parent=11 // pred_fallthru
          _
      $region12: #{tpu_custom_call.1} parent=5 // pred_fallthru
        _
      %p439 = scmp.lt.s32.totalorder %s28, 2
      // Predicated region
      $region45: #{tpu_custom_call.1} parent=5 // pred_check
        %p440 = pneg %p439
      $region46: #{tpu_custom_call.1} parent=5 // pred_check_branch
        %442 = sbr.rel (%p440) target = $region48
      $region47: #{tpu_custom_call.1} parent=5 // pred_region
        // Predicated region
        $region49: #{tpu_custom_call.1} parent=47 // pred_check
          %p443 = pneg %p69
        $region50: #{tpu_custom_call.1} parent=47 // pred_check_branch
          %445 = sbr.rel (%p443) target = $region52
        $region51: #{tpu_custom_call.1} parent=47 // pred_region
          %s446 = sand.u32 %s59, 1
          %s447 = scalar_lea.sflag [#allocation3], %s446
          %s448 = sand.u32 %s59, 1
          %s449 = smul.addr %s448, 8
          %s450 = scalar_lea.vmem [#allocation2], %s449
          %s452 = ssub.s32 128, 128
          %453 = vsyncadd %s447, %s452
          %s454 = sadd.s32 %s36, %s35
          %s455 = smul.addr %s454, 128
          %s456 = scalar_lea.hbm %s0, %s455
          %s458 = sshll.u32 %s450, 4
          %s459 = int_to_ptr.vmem [resolvable:$true] %s458
          %461 = dma.hbm_to_vmem [thread:$0]  %s456, 128, %s459, %s447
        $region52: #{tpu_custom_call.1} parent=47 // pred_fallthru
          _
      $region48: #{tpu_custom_call.1} parent=5 // pred_fallthru
        _
      %p462 = scmp.le.s32.totalorder 1, %s28
      %p463 = scmp.lt.s32.totalorder %s28, 3
      %p464 = pnand %p462, %p463
      %p465 = pneg %p464
      // Predicated region
      $region53: #{tpu_custom_call.1} parent=5 // pred_check
        _
      $region54: #{tpu_custom_call.1} parent=5 // pred_check_branch
        %467 = sbr.rel (%p464) target = $region56
      $region55: #{tpu_custom_call.1} parent=5 // pred_region
        %s468 = ssub.s32 %s28, 1
        %s469 = sand.u32 %s62, 1
        %s470 = scalar_lea.sflag [#allocation3], %s469
        %s471 = sand.u32 %s62, 1
        %s472 = smul.addr %s471, 8
        %s473 = scalar_lea.vmem [#allocation2], %s472
        // Predicated region
        $region57: #{tpu_custom_call.1} parent=55 // pred_check
          %p474 = pneg %p75
        $region58: #{tpu_custom_call.1} parent=55 // pred_check_branch
          %476 = sbr.rel (%p474) target = $region60
        $region59: #{tpu_custom_call.1} parent=55 // pred_region
          %477 = dma.done %s470, 128
        $region60: #{tpu_custom_call.1} parent=55 // pred_fallthru
          _
        // Predicated region
        $region61: #{tpu_custom_call.1} parent=55 // pred_check
          %p478 = pneg %p143
        $region62: #{tpu_custom_call.1} parent=55 // pred_check_branch
          %480 = sbr.rel (%p478) target = $region64
        $region63: #{tpu_custom_call.1} parent=55 // pred_region
          %481 = dma.done [#allocation6], 256
        $region64: #{tpu_custom_call.1} parent=55 // pred_fallthru
          _
        // Predicated region
        $region65: #{tpu_custom_call.1} parent=55 // pred_check
          %p482 = pneg %p169
        $region66: #{tpu_custom_call.1} parent=55 // pred_check_branch
          %484 = sbr.rel (%p482) target = $region68
        $region67: #{tpu_custom_call.1} parent=55 // pred_region
          %485 = dma.done [#allocation6], 256
        $region68: #{tpu_custom_call.1} parent=55 // pred_fallthru
          _
        %s486 = sand.u32 %s62, 1
        %s487 = scalar_lea.sflag [#allocation3], %s486
        %s488 = sand.u32 %s62, 1
        %s489 = smul.addr %s488, 8
        %s490 = scalar_lea.vmem [#allocation2], %s489
        %p491 = pneg %p75
        %p492 = pneg %p72
        %p493 = pneg %p96
        %p494 = pneg %p93
        %p495 = pneg %p117
        %p496 = pneg %p114
        %p497 = pneg %p143
        %p498 = pneg %p140
        %p499 = pneg %p169
        %p500 = pneg %p166
        %p501 = scmp.lt.s32.totalorder %s40, 0
        %s502 = scalar_select %p501, %s40, 0
        %s503 = smul.addr %s502, 4
        %s504 = scalar_lea.vmem %s5, %s503
        %p505 = pneg %p195
        %p506 = pneg %p192
        %p507 = scmp.lt.s32.totalorder %s40, 0
        %s508 = scalar_select %p507, %s40, 0
        %s509 = scalar_lea.vmem %s6, %s508
        %p510 = pneg %p221
        %p511 = pneg %p218
        %p512 = scmp.lt.s32.totalorder %s40, 0
        %s513 = scalar_select %p512, %s40, 0
        %s514 = scalar_lea.vmem %s7, %s513
        %p515 = pneg %p247
        %p516 = pneg %p244
        %p517 = scmp.lt.s32.totalorder %s40, 0
        %s518 = scalar_select %p517, %s40, 0
        %s519 = scalar_lea.vmem %s8, %s518
        %p520 = pneg %p273
        %p521 = pneg %p270
        %p522 = pneg %p303
        %p523 = pneg %p300
        %s524 = sand.u32 %s290, 1
        %s525 = scalar_lea.sflag [#allocation4], %s524
        %s526 = sand.u32 %s290, 1
        %s527 = smul.addr %s526, 4
        %s528 = scalar_lea.vmem [#allocation8], %s527
        %p529 = pneg %p333
        %p530 = pneg %p330
        %s531 = sand.u32 %s33, 1
        %s532 = scalar_lea.sflag [#allocation10], %s531
        %s533 = sand.u32 %s320, 1
        %s534 = smul.addr %s533, 4
        %s535 = scalar_lea.vmem [#allocation9], %s534
        %p536 = pneg %p363
        %p537 = pneg %p360
        %s538 = sand.u32 %s33, 1
        %s539 = scalar_lea.sflag [#allocation10], %s538
        %s540 = sand.u32 %s350, 1
        %s541 = smul.addr %s540, 4
        %s542 = scalar_lea.vmem [#allocation11], %s541
        %p543 = scmp.lt.s32.totalorder %s40, 0
        %s544 = scalar_select %p543, %s40, 0
        %s545 = smul.addr %s544, 4
        %s546 = scalar_lea.vmem %s5, %s545
        %p547 = scmp.lt.s32.totalorder %s40, 0
        %s548 = scalar_select %p547, %s40, 0
        %s549 = scalar_lea.vmem %s6, %s548
        %p550 = scmp.lt.s32.totalorder %s40, 0
        %s551 = scalar_select %p550, %s40, 0
        %s552 = scalar_lea.vmem %s7, %s551
        %p553 = scmp.lt.s32.totalorder %s40, 0
        %s554 = scalar_select %p553, %s40, 0
        %s555 = scalar_lea.vmem %s8, %s554
        %v557 = vld [vmem:[%s473] sm:$0xff]
        %v558 = vld [vmem:[%s1] sm:$0x1]
        %v559 = vld [vmem:[%s2] sm:$0x1]
        %vm560 = vcmask 261120
        %v561 = vsel %vm560, %v557, 0.0
        %562 = vadd.xlane.f32.xlu0 %v561
        %v563 = vpop.xlane.xlu0 %562
        %v564 = vrcp.pop 32.0
        %v565 = vmul.f32 %v563, %v564
        %v566 = vsub.f32 %v557, %v565
        %v567 = vmul.f32 %v566, %v566
        %v568 = vsel %vm560, %v567, 0.0
        %569 = vadd.xlane.f32.xlu0 %v568
        %v570 = vpop.xlane.xlu0 %569
        %v571 = vmul.f32 %v570, %v564
        %v572 = vadd.f32 %v571, 1e-05
        %v573 = vrsqrt.pop %v572
        %v574 = vmul.f32 %v566, %v573
        %v576 = vlaneseq
        %v577 = vshrl.u32 %v576, 7
        %v578 = vsub.s32 0, %v577
        %v579 = vrot.slane %v558, %v578
        %v581 = vmul.f32 %v574, %v579
        %v583 = vlaneseq
        %v584 = vshrl.u32 %v583, 7
        %v585 = vsub.s32 0, %v584
        %v586 = vrot.slane %v559, %v585
        %v588 = vadd.f32 %v581, %v586
        %v589 = vpack.c.bf16 %v588, %v588
        %v590 = vld [vmem:[#allocation5] sm:$0xf]
        %v591 = vld [vmem:[#allocation5 + $0x4] sm:$0xf]
        %v592 = vld [vmem:[#allocation5 + $0x8] sm:$0xf]
        %v593 = vld [vmem:[#allocation5 + $0xc] sm:$0xf]
        %v594 = vld [vmem:[%s549] sm:$0x1]
        %v596 = vlaneseq
        %v597 = vshrl.u32 %v596, 7
        %v598 = vsub.s32 0, %v597
        %v599 = vrot.slane %v594, %v598
        %v605 = vunpack.c.l.b16 %v590
        %v606 = vunpack.c.l.b16 %v591
        %v607 = vunpack.c.l.b16 %v592
        %v608 = vunpack.c.l.b16 %v593
        %v609 = vpack.c.b16 %v606, %v605
        %v610 = vpack.c.b16 %v608, %v607
        %v614 = vsel %vm560, %v589, 0
        %616 = vmatprep.subr.bf16.mxu0 0
        %617 = vmatpush1.bf16.msra.mxu0 %v609
        %618 = vmatprep.subr.bf16.mxu0 0
        %619 = vmatpush1.bf16.msra.mxu0 %v610
        %620 = vmatprep.subr.bf16.mxu0 0
        %621 = vmatpush1.bf16.msra.mxu0 0
        %622 = vmatprep.subr.bf16.mxu0 0
        %623 = vmatpush1.bf16.msra.mxu0 0
        %624 = vmatprep.subr.bf16.mxu0 0
        %625 = vmatpush1.bf16.msra.mxu0 0
        %626 = vmatprep.subr.bf16.mxu0 0
        %627 = vmatpush1.bf16.msra.mxu0 0
        %628 = vmatprep.subr.bf16.mxu0 0
        %629 = vmatpush1.bf16.msra.mxu0 0
        %630 = vmatprep.subr.bf16.mxu0 0
        %631 = vmatpush1.bf16.msra.mxu0 0
        %632 = vmatprep.subr.bf16.mxu0 0
        %633 = vmatpush1.bf16.msra.mxu0 0
        %634 = vmatprep.subr.bf16.mxu0 0
        %635 = vmatpush1.bf16.msra.mxu0 0
        %636 = vmatprep.subr.bf16.mxu0 0
        %637 = vmatpush1.bf16.msra.mxu0 0
        %638 = vmatprep.subr.bf16.mxu0 0
        %639 = vmatpush1.bf16.msra.mxu0 0
        %640 = vmatprep.subr.bf16.mxu0 0
        %641 = vmatpush1.bf16.msra.mxu0 0
        %642 = vmatprep.subr.bf16.mxu0 0
        %643 = vmatpush1.bf16.msra.mxu0 0
        %644 = vmatprep.subr.bf16.mxu0 0
        %645 = vmatpush1.bf16.msra.mxu0 0
        %646 = vmatprep.subr.bf16.mxu0 0
        %647 = vmatpush1.bf16.msra.mxu0 0
        %648 = vmatprep.mubr.bf16.mxu0 0
        %649 = vmatmul.mubr.bf16.gmra.mrb[0].mxu0 %v614
        %v650 = vpop.f32.mrb[0].mxu0
        %v651 = vadd.f32 %v599, %v650
        %v652 = vpop.f32.mrb[0].mxu0
        %v653 = vpop.f32.mrb[0].mxu0
        %v654 = vpop.f32.mrb[0].mxu0
        %655 = vdwg.mxu0
        %v656 = vpack.c.bf16 %v651, %v651
        %vm657 = vcmask 257024
        %658 = vst.msk [vmem:[%s528] sm:$0xf] %vm657, %v656
        %v659 = vld [vmem:[#allocation7] sm:$0xf]
        %v660 = vld [vmem:[#allocation7 + $0x4] sm:$0xf]
        %v661 = vld [vmem:[#allocation7 + $0x8] sm:$0xf]
        %v662 = vld [vmem:[#allocation7 + $0xc] sm:$0xf]
        %v663 = vld [vmem:[%s552] sm:$0x1]
        %v665 = vlaneseq
        %v666 = vshrl.u32 %v665, 7
        %v667 = vsub.s32 0, %v666
        %v668 = vrot.slane %v663, %v667
        %v674 = vunpack.c.l.b16 %v659
        %v675 = vunpack.c.l.b16 %v660
        %v676 = vunpack.c.l.b16 %v661
        %v677 = vunpack.c.l.b16 %v662
        %v678 = vpack.c.b16 %v675, %v674
        %v679 = vpack.c.b16 %v677, %v676
        %682 = vmatprep.subr.bf16.mxu0 0
        %683 = vmatpush1.bf16.msra.mxu0 %v678
        %684 = vmatprep.subr.bf16.mxu0 0
        %685 = vmatpush1.bf16.msra.mxu0 %v679
        %686 = vmatprep.subr.bf16.mxu0 0
        %687 = vmatpush1.bf16.msra.mxu0 0
        %688 = vmatprep.subr.bf16.mxu0 0
        %689 = vmatpush1.bf16.msra.mxu0 0
        %690 = vmatprep.subr.bf16.mxu0 0
        %691 = vmatpush1.bf16.msra.mxu0 0
        %692 = vmatprep.subr.bf16.mxu0 0
        %693 = vmatpush1.bf16.msra.mxu0 0
        %694 = vmatprep.subr.bf16.mxu0 0
        %695 = vmatpush1.bf16.msra.mxu0 0
        %696 = vmatprep.subr.bf16.mxu0 0
        %697 = vmatpush1.bf16.msra.mxu0 0
        %698 = vmatprep.subr.bf16.mxu0 0
        %699 = vmatpush1.bf16.msra.mxu0 0
        %700 = vmatprep.subr.bf16.mxu0 0
        %701 = vmatpush1.bf16.msra.mxu0 0
        %702 = vmatprep.subr.bf16.mxu0 0
        %703 = vmatpush1.bf16.msra.mxu0 0
        %704 = vmatprep.subr.bf16.mxu0 0
        %705 = vmatpush1.bf16.msra.mxu0 0
        %706 = vmatprep.subr.bf16.mxu0 0
        %707 = vmatpush1.bf16.msra.mxu0 0
        %708 = vmatprep.subr.bf16.mxu0 0
        %709 = vmatpush1.bf16.msra.mxu0 0
        %710 = vmatprep.subr.bf16.mxu0 0
        %711 = vmatpush1.bf16.msra.mxu0 0
        %712 = vmatprep.subr.bf16.mxu0 0
        %713 = vmatpush1.bf16.msra.mxu0 0
        %714 = vmatprep.mubr.bf16.mxu0 0
        %715 = vmatmul.mubr.bf16.gmra.mrb[0].mxu0 %v614
        %v716 = vpop.f32.mrb[0].mxu0
        %v717 = vadd.f32 %v668, %v716
        %v718 = vpop.f32.mrb[0].mxu0
        %v719 = vpop.f32.mrb[0].mxu0
        %v720 = vpop.f32.mrb[0].mxu0
        %721 = vdwg.mxu0
        %v722 = vpack.c.bf16 %v717, %v717
        %723 = vst.msk [vmem:[%s535] sm:$0xf] %vm657, %v722
        %v724 = vld [vmem:[%s546] sm:$0xf]
        %v725 = vld [vmem:[%s546 + $0x4] sm:$0xf]
        %v726 = vld [vmem:[%s546 + $0x8] sm:$0xf]
        %v727 = vld [vmem:[%s546 + $0xc] sm:$0xf]
        %v728 = vld [vmem:[%s555] sm:$0x1]
        %v730 = vlaneseq
        %v731 = vshrl.u32 %v730, 7
        %v732 = vsub.s32 0, %v731
        %v733 = vrot.slane %v728, %v732
        %v739 = vunpack.c.l.b16 %v724
        %v740 = vunpack.c.l.b16 %v725
        %v741 = vunpack.c.l.b16 %v726
        %v742 = vunpack.c.l.b16 %v727
        %v743 = vpack.c.b16 %v740, %v739
        %v744 = vpack.c.b16 %v742, %v741
        %747 = vmatprep.subr.bf16.mxu0 0
        %748 = vmatpush1.bf16.msra.mxu0 %v743
        %749 = vmatprep.subr.bf16.mxu0 0
        %750 = vmatpush1.bf16.msra.mxu0 %v744
        %751 = vmatprep.subr.bf16.mxu0 0
        %752 = vmatpush1.bf16.msra.mxu0 0
        %753 = vmatprep.subr.bf16.mxu0 0
        %754 = vmatpush1.bf16.msra.mxu0 0
        %755 = vmatprep.subr.bf16.mxu0 0
        %756 = vmatpush1.bf16.msra.mxu0 0
        %757 = vmatprep.subr.bf16.mxu0 0
        %758 = vmatpush1.bf16.msra.mxu0 0
        %759 = vmatprep.subr.bf16.mxu0 0
        %760 = vmatpush1.bf16.msra.mxu0 0
        %761 = vmatprep.subr.bf16.mxu0 0
        %762 = vmatpush1.bf16.msra.mxu0 0
        %763 = vmatprep.subr.bf16.mxu0 0
        %764 = vmatpush1.bf16.msra.mxu0 0
        %765 = vmatprep.subr.bf16.mxu0 0
        %766 = vmatpush1.bf16.msra.mxu0 0
        %767 = vmatprep.subr.bf16.mxu0 0
        %768 = vmatpush1.bf16.msra.mxu0 0
        %769 = vmatprep.subr.bf16.mxu0 0
        %770 = vmatpush1.bf16.msra.mxu0 0
        %771 = vmatprep.subr.bf16.mxu0 0
        %772 = vmatpush1.bf16.msra.mxu0 0
        %773 = vmatprep.subr.bf16.mxu0 0
        %774 = vmatpush1.bf16.msra.mxu0 0
        %775 = vmatprep.subr.bf16.mxu0 0
        %776 = vmatpush1.bf16.msra.mxu0 0
        %777 = vmatprep.subr.bf16.mxu0 0
        %778 = vmatpush1.bf16.msra.mxu0 0
        %779 = vmatprep.mubr.bf16.mxu0 0
        %780 = vmatmul.mubr.bf16.gmra.mrb[0].mxu0 %v614
        %v781 = vpop.f32.mrb[0].mxu0
        %v782 = vadd.f32 %v733, %v781
        %v783 = vpop.f32.mrb[0].mxu0
        %v784 = vpop.f32.mrb[0].mxu0
        %v785 = vpop.f32.mrb[0].mxu0
        %786 = vdwg.mxu0
        %v787 = vpack.c.bf16 %v782, %v782
        %788 = vst.msk [vmem:[%s542] sm:$0xf] %vm657, %v787
        %s789 = sand.u32 %s290, 1
        %s790 = scalar_lea.sflag [#allocation4], %s789
        %s791 = sand.u32 %s290, 1
        %s792 = smul.addr %s791, 4
        %s793 = scalar_lea.vmem [#allocation8], %s792
        %s794 = sand.u32 %s33, 1
        %s795 = scalar_lea.sflag [#allocation10], %s794
        %s796 = sand.u32 %s320, 1
        %s797 = smul.addr %s796, 4
        %s798 = scalar_lea.vmem [#allocation9], %s797
        %s799 = sand.u32 %s33, 1
        %s800 = scalar_lea.sflag [#allocation10], %s799
        %s801 = sand.u32 %s350, 1
        %s802 = smul.addr %s801, 4
        %s803 = scalar_lea.vmem [#allocation11], %s802
        // Predicated region
        $region69: #{tpu_custom_call.1} parent=55 // pred_check
          %p804 = pneg %p300
        $region70: #{tpu_custom_call.1} parent=55 // pred_check_branch
          %806 = sbr.rel (%p804) target = $region72
        $region71: #{tpu_custom_call.1} parent=55 // pred_region
          %s808 = ssub.s32 64, 64
          %809 = vsyncadd %s790, %s808
          %s810 = sadd.s32 %s40, %s39
          %s811 = sadd.s32 %s810, %s38
          %s812 = smul.addr %s811, 64
          %s813 = scalar_lea.hbm %s9, %s812
          %s815 = sshll.u32 %s793, 4
          %s816 = int_to_ptr.vmem [resolvable:$true] %s815
          %818 = dma.vmem_to_hbm [thread:$0]  %s816, 64, %s813, %s790
        $region72: #{tpu_custom_call.1} parent=55 // pred_fallthru
          _
        // Predicated region
        $region73: #{tpu_custom_call.1} parent=55 // pred_check
          %p819 = pneg %p330
        $region74: #{tpu_custom_call.1} parent=55 // pred_check_branch
          %821 = sbr.rel (%p819) target = $region76
        $region75: #{tpu_custom_call.1} parent=55 // pred_region
          %s823 = ssub.s32 64, 64
          %824 = vsyncadd %s795, %s823
          %s825 = sadd.s32 %s40, %s39
          %s826 = sadd.s32 %s825, %s38
          %s827 = smul.addr %s826, 64
          %s828 = scalar_lea.hbm %s10, %s827
          %s830 = sshll.u32 %s798, 4
          %s831 = int_to_ptr.vmem [resolvable:$true] %s830
          %833 = dma.vmem_to_hbm [thread:$0]  %s831, 64, %s828, %s795
        $region76: #{tpu_custom_call.1} parent=55 // pred_fallthru
          _
        // Predicated region
        $region77: #{tpu_custom_call.1} parent=55 // pred_check
          %p834 = pneg %p360
        $region78: #{tpu_custom_call.1} parent=55 // pred_check_branch
          %836 = sbr.rel (%p834) target = $region80
        $region79: #{tpu_custom_call.1} parent=55 // pred_region
          %s838 = ssub.s32 64, 64
          %839 = vsyncadd %s800, %s838
          %s840 = sadd.s32 %s40, %s39
          %s841 = sadd.s32 %s840, %s38
          %s842 = smul.addr %s841, 64
          %s843 = scalar_lea.hbm %s11, %s842
          %s845 = sshll.u32 %s803, 4
          %s846 = int_to_ptr.vmem [resolvable:$true] %s845
          %848 = dma.vmem_to_hbm [thread:$0]  %s846, 64, %s843, %s800
        $region80: #{tpu_custom_call.1} parent=55 // pred_fallthru
          _
      $region56: #{tpu_custom_call.1} parent=5 // pred_fallthru
        _
      %p849 = scmp.le.s32.totalorder 2, %s28
      // Predicated region
      $region81: #{tpu_custom_call.1} parent=5 // pred_check
        %p850 = pneg %p849
      $region82: #{tpu_custom_call.1} parent=5 // pred_check_branch
        %852 = sbr.rel (%p850) target = $region84
      $region83: #{tpu_custom_call.1} parent=5 // pred_region
        %s853 = ssub.s32 %s28, 2
        // Predicated region
        $region85: #{tpu_custom_call.1} parent=83 // pred_check
          %p854 = pneg %p306
        $region86: #{tpu_custom_call.1} parent=83 // pred_check_branch
          %856 = sbr.rel (%p854) target = $region88
        $region87: #{tpu_custom_call.1} parent=83 // pred_region
          %s857 = sand.u32 %s291, 1
          %s858 = scalar_lea.sflag [#allocation4], %s857
          %s859 = sand.u32 %s291, 1
          %s860 = smul.addr %s859, 4
          %s861 = scalar_lea.vmem [#allocation8], %s860
          %862 = dma.done %s858, 64
        $region88: #{tpu_custom_call.1} parent=83 // pred_fallthru
          _
        // Predicated region
        $region89: #{tpu_custom_call.1} parent=83 // pred_check
          %p863 = pneg %p336
        $region90: #{tpu_custom_call.1} parent=83 // pred_check_branch
          %865 = sbr.rel (%p863) target = $region92
        $region91: #{tpu_custom_call.1} parent=83 // pred_region
          %s866 = sand.u32 %s34, 1
          %s867 = scalar_lea.sflag [#allocation10], %s866
          %s868 = sand.u32 %s321, 1
          %s869 = smul.addr %s868, 4
          %s870 = scalar_lea.vmem [#allocation9], %s869
          %871 = dma.done %s867, 64
        $region92: #{tpu_custom_call.1} parent=83 // pred_fallthru
          _
        // Predicated region
        $region93: #{tpu_custom_call.1} parent=83 // pred_check
          %p872 = pneg %p366
        $region94: #{tpu_custom_call.1} parent=83 // pred_check_branch
          %874 = sbr.rel (%p872) target = $region96
        $region95: #{tpu_custom_call.1} parent=83 // pred_region
          %s875 = sand.u32 %s34, 1
          %s876 = scalar_lea.sflag [#allocation10], %s875
          %s877 = sand.u32 %s351, 1
          %s878 = smul.addr %s877, 4
          %s879 = scalar_lea.vmem [#allocation11], %s878
          %880 = dma.done %s876, 64
        $region96: #{tpu_custom_call.1} parent=83 // pred_fallthru
          _
      $region84: #{tpu_custom_call.1} parent=5 // pred_fallthru
        _
    $region6: #{tpu_custom_call.1} parent=1 // loop_footer
      %s32 = sadd.s32 1, %s28
    $region7: #{tpu_custom_call.1} parent=1 // loop_footer_branch
      %27 = sbr.rel target = $region3
    $region8: #{tpu_custom_call.1} parent=1 // loop_exit
      _
    %881 = vsyncpa [#allocation3], 1
    %s882 = scalar_lea.sflag [#allocation3], 1
    %883 = vsyncpa %s882, 1
    %884 = vsyncpa [#allocation6], 1
    %885 = vsyncpa [#allocation4], 1
    %s886 = scalar_lea.sflag [#allocation4], 1
    %887 = vsyncpa %s886, 1
    %888 = vsyncpa [#allocation10], 1
    %s889 = scalar_lea.sflag [#allocation10], 1
    %890 = vsyncpa %s889, 1

</llo_original>
